<compile_context>
chip_gen: v5e
topology: v5e:2x2
jax: 0.10.0
libtpu: 0.0.40
codegen_flags: <defaults>
</compile_context>

<pallas_src>
import jax
import jax.numpy as jnp
from jax.experimental import pallas as pl
from jax.experimental.pallas import tpu as pltpu

EPS_LN = 1e-5
EPS_BN = 1e-5


def selective_fusion_kernel(f1_ref, f2_ref, ln_ref, fcw_ref, dw_ref, bias_ref,
                            out_ref):
    """One grid step processes a (Bt, C, HW) block of batch elements (NCHW)."""
    bt, num_c, hw = f1_ref.shape
    d = fcw_ref.shape[1]
    inv_c = 1.0 / num_c
    inv_hw = 1.0 / hw

    # --- packed parameters (tiny, loaded once per grid step) ----------------
    lnp = ln_ref[...]                              # (C, 4): ln1_w|ln1_b|ln2_w|ln2_b
    ln1_w = lnp[:, 0:1][None, :, :]                # (1, C, 1) broadcast over (Bt,·,HW)
    ln1_b = lnp[:, 1:2][None, :, :]
    ln2_w = lnp[:, 2:3][None, :, :]
    ln2_b = lnp[:, 3:4][None, :, :]
    fcw = fcw_ref[...]                             # (C, d)   eval-BN folded in
    dw = dw_ref[...]                               # (d, C)   att1_w - att2_w
    bias = bias_ref[...]                           # (1, d + C)
    fcb = bias[:, :d]                              # (1, d)   eval-BN folded in
    db = bias[:, d:d + num_c]                      # (1, C)   att1_b - att2_b

    f1 = f1_ref[...].astype(jnp.float32)           # (Bt, C, HW)
    f2 = f2_ref[...].astype(jnp.float32)

    def layernorm(x, w, b):
        # Normalize over channels (sublane axis); single-pass statistics.
        s = jnp.sum(x, axis=1, keepdims=True)               # (Bt, 1, HW)
        ss = jnp.sum(x * x, axis=1, keepdims=True)          # (Bt, 1, HW)
        mu = s * inv_c
        var = ss * inv_c - mu * mu
        rs = jax.lax.rsqrt(var + EPS_LN)
        return (x - mu) * rs * w + b                        # (Bt, C, HW)

    y1 = layernorm(f1, ln1_w, ln1_b)
    y2 = layernorm(f2, ln2_w, ln2_b)

    # Global average pool of (y1 + y2) without materializing the sum,
    # batched over the whole block.
    s_pool = (jnp.sum(y1, axis=2) + jnp.sum(y2, axis=2)) * inv_hw       # (Bt, C)

    # fc: 1x1 conv C->d (eval-BN folded) + ReLU, then the single
    # difference-attention head d->C.  Two MXU pushes per grid step total.
    z = jnp.dot(s_pool, fcw, preferred_element_type=jnp.float32) + fcb  # (Bt, d)
    z = jnp.maximum(z, 0.0)
    logit = jnp.dot(z, dw, preferred_element_type=jnp.float32) + db     # (Bt, C)

    # 2-way branch softmax == sigmoid of the logit difference (exact).
    w1 = 1.0 / (1.0 + jnp.exp(-logit))                                  # (Bt, C)
    w1 = jax.lax.broadcast_in_dim(w1, (bt, num_c, 1), (0, 1))           # (Bt, C, 1)

    # feats_V = w1*y1 + (1-w1)*y2, with a single broadcast multiply.
    out_ref[...] = (y2 + w1 * (y1 - y2)).astype(out_ref.dtype)


def _vmem_capacity_bytes():
    try:
        return int(pltpu.get_tpu_info().vmem_capacity_bytes)
    except Exception:
        return 64 * 1024 * 1024        # conservative fallback (v7x per-core VMEM)


def selective_fusion(f1_nchw, f2_nchw, params, block_b=None):
    B, C, H, W = f1_nchw.shape
    HW = H * W
    d = params["fc_w"].shape[1]
    act_dtype = f1_nchw.dtype

    # NCHW -> (B, C, HW): contiguous reshape, no transpose / extra HBM pass.
    f1 = f1_nchw.reshape(B, C, HW)
    f2 = f2_nchw.reshape(B, C, HW)

    # --- trace-time folding & packing (4 small parameter DMAs total) --------
    # Fold eval-mode BatchNorm into the fc 1x1 conv.
    bn_scale = params["bn_g"][0] * jax.lax.rsqrt(params["bn_v"][0] + EPS_BN)     # (d,)
    fcw = (params["fc_w"] * bn_scale[None, :]).astype(jnp.float32)               # (C, d)
    fcb = ((params["fc_b"][0] - params["bn_m"][0]) * bn_scale
           + params["bn_b"][0]).astype(jnp.float32)                              # (d,)
    # Fold the two attention heads into one "difference" head.
    dw = (params["att1_w"] - params["att2_w"]).astype(jnp.float32)               # (d, C)
    db = (params["att1_b"][0] - params["att2_b"][0]).astype(jnp.float32)         # (C,)
    lnp = jnp.stack([params["ln1_w"][0], params["ln1_b"][0],
                     params["ln2_w"][0], params["ln2_b"][0]],
                    axis=1).astype(jnp.float32)                                  # (C, 4)
    bias = jnp.concatenate([fcb, db]).reshape(1, d + C)                          # (1, d+C)

    # --- hardware-aware VMEM budget & batch-block size -----------------------
    vmem_cap = _vmem_capacity_bytes()                 # 128 MiB v5e/v6e, 64 MiB v7x
    vmem_limit = int(min(vmem_cap * 3 // 4, 96 * 1024 * 1024))

    if block_b is None:
        per_elem = C * HW * act_dtype.itemsize
        # ~10x block bytes: 2 inputs + 1 output double-buffered + y1/y2 temps.
        cap_by_vmem = max(1, (vmem_limit // 2) // (10 * per_elem))
        # Keep >= 2 grid steps so activation DMAs overlap compute and the
        # batch axis can shard across both TensorCores on v7x; cap at 8 to
        # bound the per-step working set.
        block_b = max(1, min(8, pl.cdiv(B, 2), cap_by_vmem))
    block_b = int(min(block_b, B))
    grid_b = pl.cdiv(B, block_b)
    # Note: if B % block_b != 0 the padded rows of the last block run LayerNorm
    # on garbage (results for those rows are masked on store, so output stays
    # correct); keep B a multiple of block_b if NaN-debug runs matter.

    act_spec = pl.BlockSpec((block_b, C, HW), lambda i: (i, 0, 0))

    def full_spec(shape):
        return pl.BlockSpec(shape, lambda i: (0,) * len(shape))

    out = pl.pallas_call(
        selective_fusion_kernel,
        out_shape=jax.ShapeDtypeStruct((B, C, HW), act_dtype),
        grid=(grid_b,),
        in_specs=[
            act_spec, act_spec,
            full_spec((C, 4)),         # LayerNorm weights/biases
            full_spec((C, d)),         # fc weight (BN folded)
            full_spec((d, C)),         # attention difference weight
            full_spec((1, d + C)),     # fc bias | attention difference bias
        ],
        out_specs=act_spec,
        compiler_params=pltpu.CompilerParams(
            dimension_semantics=("parallel",),
            vmem_limit_bytes=vmem_limit,
        ),
    )(f1, f2, lnp, fcw, dw, bias)

    return out.reshape(B, C, H, W)


def selective_fusion_ref(f1_nchw, f2_nchw, params):
    """Pure-JAX reference mirroring the PyTorch forward (BN in eval mode)."""
    x1 = jnp.transpose(f1_nchw, (0, 2, 3, 1))  # NHWC
    x2 = jnp.transpose(f2_nchw, (0, 2, 3, 1))

    def ln(x, w, b):
        mu = jnp.mean(x, axis=-1, keepdims=True)
        var = jnp.mean((x - mu) ** 2, axis=-1, keepdims=True)
        return (x - mu) / jnp.sqrt(var + EPS_LN) * w[0] + b[0]

    y1 = ln(x1, params["ln1_w"], params["ln1_b"])
    y2 = ln(x2, params["ln2_w"], params["ln2_b"])
    u = y1 + y2                                     # (B, H, W, C)
    s = jnp.mean(u, axis=(1, 2))                    # (B, C)
    z = s @ params["fc_w"] + params["fc_b"][0]
    z = (z - params["bn_m"][0]) / jnp.sqrt(params["bn_v"][0] + EPS_BN)
    z = z * params["bn_g"][0] + params["bn_b"][0]
    z = jnp.maximum(z, 0.0)
    a1 = z @ params["att1_w"] + params["att1_b"][0]
    a2 = z @ params["att2_w"] + params["att2_b"][0]
    a = jnp.stack([a1, a2], axis=1)                 # (B, 2, C)
    a = jax.nn.softmax(a, axis=1)
    w1 = a[:, 0][:, None, None, :]
    w2 = a[:, 1][:, None, None, :]
    v = y1 * w1 + y2 * w2
    return jnp.transpose(v, (0, 3, 1, 2))


if __name__ == "__main__":
    B, C, H, W = 2, 32, 16, 16   # features = 32; HW = 256 -> lane-dense blocks
    d = 32                       # bottleneck dim (module default d=32)

    key = jax.random.PRNGKey(0)
    ks = jax.random.split(key, 16)

    f1 = jax.random.normal(ks[0], (B, C, H, W), dtype=jnp.float32)
    f2 = jax.random.normal(ks[1], (B, C, H, W), dtype=jnp.float32)

    params = {
        # LayerNorm(features): weight/bias over channel dim
        "ln1_w": 1.0 + 0.1 * jax.random.normal(ks[2], (1, C), jnp.float32),
        "ln1_b": 0.1 * jax.random.normal(ks[3], (1, C), jnp.float32),
        "ln2_w": 1.0 + 0.1 * jax.random.normal(ks[4], (1, C), jnp.float32),
        "ln2_b": 0.1 * jax.random.normal(ks[5], (1, C), jnp.float32),
        # Conv2d(features, d, 1) -> (C, d) matmul weight + bias
        "fc_w": 0.1 * jax.random.normal(ks[6], (C, d), jnp.float32),
        "fc_b": 0.1 * jax.random.normal(ks[7], (1, d), jnp.float32),
        # BatchNorm2d(d) in eval mode (running stats)
        "bn_g": 1.0 + 0.1 * jax.random.normal(ks[8], (1, d), jnp.float32),
        "bn_b": 0.1 * jax.random.normal(ks[9], (1, d), jnp.float32),
        "bn_m": 0.1 * jax.random.normal(ks[10], (1, d), jnp.float32),
        "bn_v": 1.0 + 0.1 * jax.random.uniform(ks[11], (1, d), jnp.float32),
        # Two Conv2d(d, features, 1) attention heads -> (d, C) weights + bias
        "att1_w": 0.1 * jax.random.normal(ks[12], (d, C), jnp.float32),
        "att1_b": 0.1 * jax.random.normal(ks[13], (1, C), jnp.float32),
        "att2_w": 0.1 * jax.random.normal(ks[14], (d, C), jnp.float32),
        "att2_b": 0.1 * jax.random.normal(ks[15], (1, C), jnp.float32),
    }

    out = jax.block_until_ready(selective_fusion(f1, f2, params))
    ref = jax.block_until_ready(selective_fusion_ref(f1, f2, params))

    assert out.shape == (B, C, H, W), out.shape
    max_err = float(jnp.max(jnp.abs(out - ref)))
    assert jnp.allclose(out, ref, atol=2e-4, rtol=2e-4), max_err
    print("KERNEL_OK")
</pallas_src>

<mosaic_0001>
module attributes {stable_mosaic.version = 11 : i64} {
  func.func @selective_fusion_kernel(%arg0: i32, %arg1: memref<1x32x256xf32, #tpu.memory_space<vmem>>, %arg2: memref<1x32x256xf32, #tpu.memory_space<vmem>>, %arg3: memref<32x4xf32, #tpu.memory_space<vmem>>, %arg4: memref<32x32xf32, #tpu.memory_space<vmem>>, %arg5: memref<32x32xf32, #tpu.memory_space<vmem>>, %arg6: memref<1x64xf32, #tpu.memory_space<vmem>>, %arg7: memref<1x32x256xf32, #tpu.memory_space<vmem>>) attributes {dimension_semantics = [#tpu.dimension_semantics<parallel>], iteration_bounds = array<i64: 2>, scalar_prefetch = 0 : i64, scratch_operands = 0 : i64, tpu.core_type = #tpu.core_type<tc>, window_params = [{transform_indices = @transform_0, window_bounds = array<i64: 1, 32, 256>}, {transform_indices = @transform_1, window_bounds = array<i64: 1, 32, 256>}, {pipeline_mode = #tpu.pipeline_mode<synchronous>, transform_indices = @transform_2, window_bounds = array<i64: 32, 4>}, {pipeline_mode = #tpu.pipeline_mode<synchronous>, transform_indices = @transform_3, window_bounds = array<i64: 32, 32>}, {pipeline_mode = #tpu.pipeline_mode<synchronous>, transform_indices = @transform_4, window_bounds = array<i64: 32, 32>}, {pipeline_mode = #tpu.pipeline_mode<synchronous>, transform_indices = @transform_5, window_bounds = array<i64: 1, 64>}, {transform_indices = @transform_6, window_bounds = array<i64: 1, 32, 256>}]} {
    %c0 = arith.constant 0 : index
    %c0_0 = arith.constant 0 : index
    %0 = vector.load %arg3[%c0, %c0_0] : memref<32x4xf32, #tpu.memory_space<vmem>>, vector<32x4xf32>
    %1 = vector.extract_strided_slice %0 {offsets = [0, 0], sizes = [32, 1], strides = [1, 1]} : vector<32x4xf32> to vector<32x1xf32>
    %2 = vector.shape_cast %1 : vector<32x1xf32> to vector<1x32x1xf32>
    %3 = vector.extract_strided_slice %0 {offsets = [0, 1], sizes = [32, 1], strides = [1, 1]} : vector<32x4xf32> to vector<32x1xf32>
    %4 = vector.shape_cast %3 : vector<32x1xf32> to vector<1x32x1xf32>
    %5 = vector.extract_strided_slice %0 {offsets = [0, 2], sizes = [32, 1], strides = [1, 1]} : vector<32x4xf32> to vector<32x1xf32>
    %6 = vector.shape_cast %5 : vector<32x1xf32> to vector<1x32x1xf32>
    %7 = vector.extract_strided_slice %0 {offsets = [0, 3], sizes = [32, 1], strides = [1, 1]} : vector<32x4xf32> to vector<32x1xf32>
    %8 = vector.shape_cast %7 : vector<32x1xf32> to vector<1x32x1xf32>
    %c0_1 = arith.constant 0 : index
    %c0_2 = arith.constant 0 : index
    %9 = vector.load %arg4[%c0_1, %c0_2] : memref<32x32xf32, #tpu.memory_space<vmem>>, vector<32x32xf32>
    %c0_3 = arith.constant 0 : index
    %c0_4 = arith.constant 0 : index
    %10 = vector.load %arg5[%c0_3, %c0_4] : memref<32x32xf32, #tpu.memory_space<vmem>>, vector<32x32xf32>
    %c0_5 = arith.constant 0 : index
    %c0_6 = arith.constant 0 : index
    %11 = vector.load %arg6[%c0_5, %c0_6] : memref<1x64xf32, #tpu.memory_space<vmem>>, vector<1x64xf32>
    %12 = vector.extract_strided_slice %11 {offsets = [0, 0], sizes = [1, 32], strides = [1, 1]} : vector<1x64xf32> to vector<1x32xf32>
    %13 = vector.extract_strided_slice %11 {offsets = [0, 32], sizes = [1, 32], strides = [1, 1]} : vector<1x64xf32> to vector<1x32xf32>
    %c0_7 = arith.constant 0 : index
    %c0_8 = arith.constant 0 : index
    %c0_9 = arith.constant 0 : index
    %14 = vector.load %arg1[%c0_7, %c0_8, %c0_9] : memref<1x32x256xf32, #tpu.memory_space<vmem>>, vector<1x32x256xf32>
    %c0_10 = arith.constant 0 : index
    %c0_11 = arith.constant 0 : index
    %c0_12 = arith.constant 0 : index
    %15 = vector.load %arg2[%c0_10, %c0_11, %c0_12] : memref<1x32x256xf32, #tpu.memory_space<vmem>>, vector<1x32x256xf32>
    %cst = arith.constant dense<0.000000e+00> : vector<1x256xf32>
    %16 = vector.multi_reduction <add>, %14, %cst [1] : vector<1x32x256xf32> to vector<1x256xf32>
    %17 = vector.shape_cast %16 : vector<1x256xf32> to vector<1x1x256xf32>
    %18 = arith.mulf %14, %14 : vector<1x32x256xf32>
    %cst_13 = arith.constant dense<0.000000e+00> : vector<1x256xf32>
    %19 = vector.multi_reduction <add>, %18, %cst_13 [1] : vector<1x32x256xf32> to vector<1x256xf32>
    %20 = vector.shape_cast %19 : vector<1x256xf32> to vector<1x1x256xf32>
    %cst_14 = arith.constant 3.125000e-02 : f32
    %21 = vector.broadcast %cst_14 : f32 to vector<1x1x256xf32>
    %22 = arith.mulf %17, %21 : vector<1x1x256xf32>
    %cst_15 = arith.constant 3.125000e-02 : f32
    %23 = vector.broadcast %cst_15 : f32 to vector<1x1x256xf32>
    %24 = arith.mulf %20, %23 : vector<1x1x256xf32>
    %25 = arith.mulf %22, %22 : vector<1x1x256xf32>
    %26 = arith.subf %24, %25 : vector<1x1x256xf32>
    %cst_16 = arith.constant 9.99999974E-6 : f32
    %27 = vector.broadcast %cst_16 : f32 to vector<1x1x256xf32>
    %28 = arith.addf %26, %27 : vector<1x1x256xf32>
    %29 = math.rsqrt %28 : vector<1x1x256xf32>
    %30 = vector.broadcast %22 : vector<1x1x256xf32> to vector<1x32x256xf32>
    %31 = arith.subf %14, %30 : vector<1x32x256xf32>
    %32 = vector.broadcast %29 : vector<1x1x256xf32> to vector<1x32x256xf32>
    %33 = arith.mulf %31, %32 : vector<1x32x256xf32>
    %34 = vector.broadcast %2 : vector<1x32x1xf32> to vector<1x32x256xf32>
    %35 = arith.mulf %33, %34 : vector<1x32x256xf32>
    %36 = vector.broadcast %4 : vector<1x32x1xf32> to vector<1x32x256xf32>
    %37 = arith.addf %35, %36 : vector<1x32x256xf32>
    %cst_17 = arith.constant dense<0.000000e+00> : vector<1x256xf32>
    %38 = vector.multi_reduction <add>, %15, %cst_17 [1] : vector<1x32x256xf32> to vector<1x256xf32>
    %39 = vector.shape_cast %38 : vector<1x256xf32> to vector<1x1x256xf32>
    %40 = arith.mulf %15, %15 : vector<1x32x256xf32>
    %cst_18 = arith.constant dense<0.000000e+00> : vector<1x256xf32>
    %41 = vector.multi_reduction <add>, %40, %cst_18 [1] : vector<1x32x256xf32> to vector<1x256xf32>
    %42 = vector.shape_cast %41 : vector<1x256xf32> to vector<1x1x256xf32>
    %cst_19 = arith.constant 3.125000e-02 : f32
    %43 = vector.broadcast %cst_19 : f32 to vector<1x1x256xf32>
    %44 = arith.mulf %39, %43 : vector<1x1x256xf32>
    %cst_20 = arith.constant 3.125000e-02 : f32
    %45 = vector.broadcast %cst_20 : f32 to vector<1x1x256xf32>
    %46 = arith.mulf %42, %45 : vector<1x1x256xf32>
    %47 = arith.mulf %44, %44 : vector<1x1x256xf32>
    %48 = arith.subf %46, %47 : vector<1x1x256xf32>
    %cst_21 = arith.constant 9.99999974E-6 : f32
    %49 = vector.broadcast %cst_21 : f32 to vector<1x1x256xf32>
    %50 = arith.addf %48, %49 : vector<1x1x256xf32>
    %51 = math.rsqrt %50 : vector<1x1x256xf32>
    %52 = vector.broadcast %44 : vector<1x1x256xf32> to vector<1x32x256xf32>
    %53 = arith.subf %15, %52 : vector<1x32x256xf32>
    %54 = vector.broadcast %51 : vector<1x1x256xf32> to vector<1x32x256xf32>
    %55 = arith.mulf %53, %54 : vector<1x32x256xf32>
    %56 = vector.broadcast %6 : vector<1x32x1xf32> to vector<1x32x256xf32>
    %57 = arith.mulf %55, %56 : vector<1x32x256xf32>
    %58 = vector.broadcast %8 : vector<1x32x1xf32> to vector<1x32x256xf32>
    %59 = arith.addf %57, %58 : vector<1x32x256xf32>
    %cst_22 = arith.constant dense<0.000000e+00> : vector<1x32xf32>
    %60 = vector.multi_reduction <add>, %37, %cst_22 [2] : vector<1x32x256xf32> to vector<1x32xf32>
    %cst_23 = arith.constant dense<0.000000e+00> : vector<1x32xf32>
    %61 = vector.multi_reduction <add>, %59, %cst_23 [2] : vector<1x32x256xf32> to vector<1x32xf32>
    %62 = arith.addf %60, %61 : vector<1x32xf32>
    %cst_24 = arith.constant 3.906250e-03 : f32
    %63 = vector.broadcast %cst_24 : f32 to vector<1x32xf32>
    %64 = arith.mulf %62, %63 : vector<1x32xf32>
    %cst_25 = arith.constant dense<0.000000e+00> : vector<1x32xf32>
    %65 = tpu.matmul %64, %9, %cst_25 {dimension_numbers = #tpu.dot_dimension_numbers<[1], [0], [0], [1], [0, 0, 1, 1], [], []>} : vector<1x32xf32>, vector<32x32xf32>, vector<1x32xf32> -> vector<1x32xf32>
    %66 = arith.addf %65, %12 : vector<1x32xf32>
    %cst_26 = arith.constant 0.000000e+00 : f32
    %67 = vector.broadcast %cst_26 : f32 to vector<1x32xf32>
    %68 = arith.maximumf %66, %67 : vector<1x32xf32>
    %cst_27 = arith.constant dense<0.000000e+00> : vector<1x32xf32>
    %69 = tpu.matmul %68, %10, %cst_27 {dimension_numbers = #tpu.dot_dimension_numbers<[1], [0], [0], [1], [0, 0, 1, 1], [], []>} : vector<1x32xf32>, vector<32x32xf32>, vector<1x32xf32> -> vector<1x32xf32>
    %70 = arith.addf %69, %13 : vector<1x32xf32>
    %cst_28 = arith.constant 0.000000e+00 : f32
    %71 = vector.broadcast %cst_28 : f32 to vector<1x32xf32>
    %72 = arith.subf %71, %70 : vector<1x32xf32>
    %73 = math.exp %72 : vector<1x32xf32>
    %cst_29 = arith.constant 1.000000e+00 : f32
    %74 = vector.broadcast %cst_29 : f32 to vector<1x32xf32>
    %75 = arith.addf %74, %73 : vector<1x32xf32>
    %cst_30 = arith.constant 1.000000e+00 : f32
    %76 = vector.broadcast %cst_30 : f32 to vector<1x32xf32>
    %77 = arith.divf %76, %75 : vector<1x32xf32>
    %78 = vector.shape_cast %77 : vector<1x32xf32> to vector<1x32x1xf32>
    %79 = arith.subf %37, %59 : vector<1x32x256xf32>
    %80 = vector.broadcast %78 : vector<1x32x1xf32> to vector<1x32x256xf32>
    %81 = arith.mulf %80, %79 : vector<1x32x256xf32>
    %82 = arith.addf %59, %81 : vector<1x32x256xf32>
    %c0_31 = arith.constant 0 : index
    %c0_32 = arith.constant 0 : index
    %c0_33 = arith.constant 0 : index
    %83 = vector.load %arg7[%c0_31, %c0_32, %c0_33] : memref<1x32x256xf32, #tpu.memory_space<vmem>>, vector<1x32x256xf32>
    tpu.vector_store %arg7[%c0_31, %c0_32, %c0_33], %82 {strides = array<i32>} : memref<1x32x256xf32, #tpu.memory_space<vmem>>, vector<1x32x256xf32>,
    return
  }
  func.func @transform_0(%arg0: i32) -> (i32, i32, i32) {
    %c0_i32 = arith.constant 0 : i32
    %c0_i32_0 = arith.constant 0 : i32
    %c0_i32_1 = arith.constant 0 : i32
    return %arg0, %c0_i32, %c0_i32_0 : i32, i32, i32
  }
  func.func @transform_1(%arg0: i32) -> (i32, i32, i32) {
    %c0_i32 = arith.constant 0 : i32
    %c0_i32_0 = arith.constant 0 : i32
    %c0_i32_1 = arith.constant 0 : i32
    return %arg0, %c0_i32, %c0_i32_0 : i32, i32, i32
  }
  func.func @transform_2(%arg0: i32) -> (i32, i32) {
    %c0_i32 = arith.constant 0 : i32
    %c0_i32_0 = arith.constant 0 : i32
    %c0_i32_1 = arith.constant 0 : i32
    return %c0_i32, %c0_i32_0 : i32, i32
  }
  func.func @transform_3(%arg0: i32) -> (i32, i32) {
    %c0_i32 = arith.constant 0 : i32
    %c0_i32_0 = arith.constant 0 : i32
    %c0_i32_1 = arith.constant 0 : i32
    return %c0_i32, %c0_i32_0 : i32, i32
  }
  func.func @transform_4(%arg0: i32) -> (i32, i32) {
    %c0_i32 = arith.constant 0 : i32
    %c0_i32_0 = arith.constant 0 : i32
    %c0_i32_1 = arith.constant 0 : i32
    return %c0_i32, %c0_i32_0 : i32, i32
  }
  func.func @transform_5(%arg0: i32) -> (i32, i32) {
    %c0_i32 = arith.constant 0 : i32
    %c0_i32_0 = arith.constant 0 : i32
    %c0_i32_1 = arith.constant 0 : i32
    return %c0_i32, %c0_i32_0 : i32, i32
  }
  func.func @transform_6(%arg0: i32) -> (i32, i32, i32) {
    %c0_i32 = arith.constant 0 : i32
    %c0_i32_0 = arith.constant 0 : i32
    %c0_i32_1 = arith.constant 0 : i32
    return %arg0, %c0_i32, %c0_i32_0 : i32, i32, i32
  }
}

</mosaic_0001>

<llo_original>
// kernel: tpu_custom_call.1
$region0: #{tpu_custom_call.1}
  #allocation0 [shape = 'u32[]', space=smem, size = 0x4, offset = 0x4, fixed_abs, tag = 'smem constant byte address 0x4 - core index']
  #allocation1 [shape = 'u32[72,128]{1,0:T(1,128)}', space=vmem, size = 0x9000, scoped, tag = 'internal scratch']
  %s0 = inlined_call_operand.hbm [shape: f32[2,32,256], index: 0, kind: input, shape index: {}]
  %s1 = inlined_call_operand.hbm [shape: f32[2,32,256], index: 1, kind: input, shape index: {}]
  %s2 = inlined_call_operand.vmem [shape: f32[32,4], index: 2, kind: input, shape index: {}]
  %s3 = inlined_call_operand.vmem [shape: f32[32,32], index: 3, kind: input, shape index: {}]
  %s4 = inlined_call_operand.hbm [shape: f32[32,32], index: 4, kind: input, shape index: {}]
  %s5 = inlined_call_operand.vmem [shape: f32[1,64], index: 5, kind: input, shape index: {}]
  %s6 = inlined_call_operand.hbm [shape: f32[2,32,256], index: 6, kind: output, shape index: {}]
  %s7 = sld [smem:[#allocation0]]
  $region69: #{tpu_custom_call.1} parent=0
    _
  %s9 = ssub.s32 1, %s7
  %s10 = scalar_select 0, %s9, %s7
  $region1: #{tpu_custom_call.1} parent=0
    #allocation2 [shape = 'u8[65536]{0}', space=vmem, size = 0x10000, scoped, tag = 'input window, operand 0']
    #allocation3 [shape = 's32[2]{0}', space=sflag, size = 0x8, scoped, tag = 'scoped memory for tpu_custom_call.1']
    #allocation4 [shape = 's32[2]{0}', space=sflag, size = 0x8, scoped, tag = 'scoped memory for tpu_custom_call.1']
    #allocation5 [shape = 'u8[65536]{0}', space=vmem, size = 0x10000, scoped, tag = 'input window, operand 1']
    #allocation6 [shape = 's32[2]{0}', space=sflag, size = 0x8, scoped, tag = 'scoped memory for tpu_custom_call.1']
    #allocation7 [shape = 'u8[16384]{0}', space=vmem, size = 0x4000, scoped, tag = 'input window, operand 4, single buffered']
    #allocation8 [shape = 'u8[65536]{0}', space=vmem, size = 0x10000, scoped, tag = 'output window, operand 0']
    %11 = vsyncpa [#allocation3], 0
    %s12 = scalar_lea.sflag [#allocation3], 1
    %13 = vsyncpa %s12, 0
    %14 = vsyncpa [#allocation6], 0
    %s15 = scalar_lea.sflag [#allocation6], 1
    %16 = vsyncpa %s15, 0
    %17 = vsyncpa [#allocation4], 0
    %s18 = scalar_lea.sflag [#allocation4], 1
    %19 = vsyncpa %s18, 0
    loop: start=0, step=1, limit=4
    $region2: #{tpu_custom_call.1} parent=1 // loop_pre_header
      _
    $region3: #{tpu_custom_call.1} parent=1 // loop_header
      %s21 = sphi 0, %s25
      %p22 = scmp.ge.s32.totalorder %s21, 4
      %s31 = sphi 0, %s33
      %s34 = sphi 0, %s31
      %s35 = sphi 0, %s34
      %s51 = sphi 0, %s35
      %s57 = sphi 0, %s59
      %s60 = sphi 0, %s57
      %s61 = sphi 0, %s60
      %s77 = sphi 0, %s61
      %s81 = sphi 0, %s81
      %s83 = sphi 0, %s81
      %s84 = sphi 0, %s83
      %s98 = sphi 0, %s84
      %s102 = sphi 0, %s102
      %s104 = sphi 0, %s102
      %s105 = sphi 0, %s104
      %s119 = sphi 0, %s105
      %s123 = sphi 0, %s123
      %s125 = sphi 0, %s123
      %s126 = sphi 0, %s125
      %s140 = sphi 0, %s126
      %s144 = sphi 0, %s144
      %s146 = sphi 0, %s144
      %s147 = sphi 0, %s146
      %s161 = sphi 0, %s147
      %s167 = sphi 0, %s169
      %s170 = sphi 0, %s167
      %s171 = sphi 0, %s170
      %s187 = sphi 0, %s171
    $region4: #{tpu_custom_call.1} parent=1 // loop_header_branch
      %24 = sbr.rel (%p22) target = $region8
    $region5: #{tpu_custom_call.1} parent=1 // loop_body
      %s26 = ssub.s32 %s21, 1
      %s27 = ssub.s32 %s21, 2
      %s28 = sadd.s32 %s21, 1
      %s29 = ssub.s32 %s21, %s28
      %p30 = scmp.eq.s32.totalorder %s29, 0
      %s32 = sadd.s32 %s31, 1
      %s33 = scalar_select %p30, %s31, %s32
      %p36 = pneg %p30
      %p37 = scmp.eq.s32.totalorder %s21, 1
      %p38 = por %p36, %p37
      %p39 = scmp.ne.s32.totalorder %s31, %s34
      %p40 = scmp.eq.s32.totalorder %s21, 0
      %p41 = por %p39, %p40
      %p42 = scmp.ne.s32.totalorder %s31, %s34
      %p43 = scmp.eq.s32.totalorder %s26, 1
      %p44 = por %p42, %p43
      %p45 = scmp.ne.s32.totalorder %s34, %s35
      %p46 = scmp.eq.s32.totalorder %s26, 0
      %p47 = por %p45, %p46
      %p48 = scmp.ne.s32.totalorder %s34, %s35
      %p49 = scmp.eq.s32.totalorder %s27, 1
      %p50 = por %p48, %p49
      %p52 = scmp.ne.s32.totalorder %s35, %s51
      %p53 = scmp.eq.s32.totalorder %s27, 0
      %p54 = por %p52, %p53
      %s55 = ssub.s32 %s21, %s28
      %p56 = scmp.eq.s32.totalorder %s55, 0
      %s58 = sadd.s32 %s57, 1
      %s59 = scalar_select %p56, %s57, %s58
      %p62 = pneg %p56
      %p63 = scmp.eq.s32.totalorder %s21, 1
      %p64 = por %p62, %p63
      %p65 = scmp.ne.s32.totalorder %s57, %s60
      %p66 = scmp.eq.s32.totalorder %s21, 0
      %p67 = por %p65, %p66
      %p68 = scmp.ne.s32.totalorder %s57, %s60
      %p69 = scmp.eq.s32.totalorder %s26, 1
      %p70 = por %p68, %p69
      %p71 = scmp.ne.s32.totalorder %s60, %s61
      %p72 = scmp.eq.s32.totalorder %s26, 0
      %p73 = por %p71, %p72
      %p74 = scmp.ne.s32.totalorder %s60, %s61
      %p75 = scmp.eq.s32.totalorder %s27, 1
      %p76 = por %p74, %p75
      %p78 = scmp.ne.s32.totalorder %s61, %s77
      %p79 = scmp.eq.s32.totalorder %s27, 0
      %p80 = por %p78, %p79
      %s82 = sadd.s32 %s81, 1
      %p85 = scmp.eq.s32.totalorder %s21, 1
      %p86 = scmp.ne.s32.totalorder %s81, %s83
      %p87 = scmp.eq.s32.totalorder %s21, 0
      %p88 = por %p86, %p87
      %p89 = scmp.ne.s32.totalorder %s81, %s83
      %p90 = scmp.eq.s32.totalorder %s26, 1
      %p91 = por %p89, %p90
      %p92 = scmp.ne.s32.totalorder %s83, %s84
      %p93 = scmp.eq.s32.totalorder %s26, 0
      %p94 = por %p92, %p93
      %p95 = scmp.ne.s32.totalorder %s83, %s84
      %p96 = scmp.eq.s32.totalorder %s27, 1
      %p97 = por %p95, %p96
      %p99 = scmp.ne.s32.totalorder %s84, %s98
      %p100 = scmp.eq.s32.totalorder %s27, 0
      %p101 = por %p99, %p100
      %s103 = sadd.s32 %s102, 1
      %p106 = scmp.eq.s32.totalorder %s21, 1
      %p107 = scmp.ne.s32.totalorder %s102, %s104
      %p108 = scmp.eq.s32.totalorder %s21, 0
      %p109 = por %p107, %p108
      %p110 = scmp.ne.s32.totalorder %s102, %s104
      %p111 = scmp.eq.s32.totalorder %s26, 1
      %p112 = por %p110, %p111
      %p113 = scmp.ne.s32.totalorder %s104, %s105
      %p114 = scmp.eq.s32.totalorder %s26, 0
      %p115 = por %p113, %p114
      %p116 = scmp.ne.s32.totalorder %s104, %s105
      %p117 = scmp.eq.s32.totalorder %s27, 1
      %p118 = por %p116, %p117
      %p120 = scmp.ne.s32.totalorder %s105, %s119
      %p121 = scmp.eq.s32.totalorder %s27, 0
      %p122 = por %p120, %p121
      %s124 = sadd.s32 %s123, 1
      %p127 = scmp.eq.s32.totalorder %s21, 1
      %p128 = scmp.ne.s32.totalorder %s123, %s125
      %p129 = scmp.eq.s32.totalorder %s21, 0
      %p130 = por %p128, %p129
      %p131 = scmp.ne.s32.totalorder %s123, %s125
      %p132 = scmp.eq.s32.totalorder %s26, 1
      %p133 = por %p131, %p132
      %p134 = scmp.ne.s32.totalorder %s125, %s126
      %p135 = scmp.eq.s32.totalorder %s26, 0
      %p136 = por %p134, %p135
      %p137 = scmp.ne.s32.totalorder %s125, %s126
      %p138 = scmp.eq.s32.totalorder %s27, 1
      %p139 = por %p137, %p138
      %p141 = scmp.ne.s32.totalorder %s126, %s140
      %p142 = scmp.eq.s32.totalorder %s27, 0
      %p143 = por %p141, %p142
      %s145 = sadd.s32 %s144, 1
      %p148 = scmp.eq.s32.totalorder %s21, 1
      %p149 = scmp.ne.s32.totalorder %s144, %s146
      %p150 = scmp.eq.s32.totalorder %s21, 0
      %p151 = por %p149, %p150
      %p152 = scmp.ne.s32.totalorder %s144, %s146
      %p153 = scmp.eq.s32.totalorder %s26, 1
      %p154 = por %p152, %p153
      %p155 = scmp.ne.s32.totalorder %s146, %s147
      %p156 = scmp.eq.s32.totalorder %s26, 0
      %p157 = por %p155, %p156
      %p158 = scmp.ne.s32.totalorder %s146, %s147
      %p159 = scmp.eq.s32.totalorder %s27, 1
      %p160 = por %p158, %p159
      %p162 = scmp.ne.s32.totalorder %s147, %s161
      %p163 = scmp.eq.s32.totalorder %s27, 0
      %p164 = por %p162, %p163
      %s165 = ssub.s32 %s21, %s28
      %p166 = scmp.eq.s32.totalorder %s165, 0
      %s168 = sadd.s32 %s167, 1
      %s169 = scalar_select %p166, %s167, %s168
      %p172 = pneg %p166
      %p173 = scmp.eq.s32.totalorder %s21, 1
      %p174 = por %p172, %p173
      %p175 = scmp.ne.s32.totalorder %s167, %s170
      %p176 = scmp.eq.s32.totalorder %s21, 0
      %p177 = por %p175, %p176
      %p178 = scmp.ne.s32.totalorder %s167, %s170
      %p179 = scmp.eq.s32.totalorder %s26, 1
      %p180 = por %p178, %p179
      %p181 = scmp.ne.s32.totalorder %s170, %s171
      %p182 = scmp.eq.s32.totalorder %s26, 0
      %p183 = por %p181, %p182
      %p184 = scmp.ne.s32.totalorder %s170, %s171
      %p185 = scmp.eq.s32.totalorder %s27, 1
      %p186 = por %p184, %p185
      %p188 = scmp.ne.s32.totalorder %s171, %s187
      %p189 = scmp.eq.s32.totalorder %s27, 0
      %p190 = por %p188, %p189
      %p191 = scmp.le.s32.totalorder 1, %s21
      %p192 = scmp.lt.s32.totalorder %s21, 3
      %p193 = pnand %p191, %p192
      %p194 = pneg %p193
      // Predicated region
      $region9: #{tpu_custom_call.1} parent=5 // pred_check
        _
      $region10: #{tpu_custom_call.1} parent=5 // pred_check_branch
        %196 = sbr.rel (%p193) target = $region12
      $region11: #{tpu_custom_call.1} parent=5 // pred_region
        %s197 = ssub.s32 %s21, 1
        // Predicated region
        $region13: #{tpu_custom_call.1} parent=11 // pred_check
          %p198 = pneg %p94
        $region14: #{tpu_custom_call.1} parent=11 // pred_check_branch
          %200 = sbr.rel (%p198) target = $region16
        $region15: #{tpu_custom_call.1} parent=11 // pred_region
          _
        $region16: #{tpu_custom_call.1} parent=11 // pred_fallthru
          _
        // Predicated region
        $region17: #{tpu_custom_call.1} parent=11 // pred_check
          %p201 = pneg %p115
        $region18: #{tpu_custom_call.1} parent=11 // pred_check_branch
          %203 = sbr.rel (%p201) target = $region20
        $region19: #{tpu_custom_call.1} parent=11 // pred_region
          _
        $region20: #{tpu_custom_call.1} parent=11 // pred_fallthru
          _
        // Predicated region
        $region21: #{tpu_custom_call.1} parent=11 // pred_check
          %p204 = pneg %p136
        $region22: #{tpu_custom_call.1} parent=11 // pred_check_branch
          %206 = sbr.rel (%p204) target = $region24
        $region23: #{tpu_custom_call.1} parent=11 // pred_region
          %208 = vsyncadd [#allocation6], 0
          %s209 = sshll.u32 %s4, 4
          %s210 = int_to_ptr.hbm [resolvable:$true] %s209
          %s211 = sshll.u32 [#allocation7], 4
          %s212 = int_to_ptr.vmem [resolvable:$true] %s211
          %217 = dma.hbm_to_vmem [thread:$0]  %s210, 512, %s212, [#allocation6], 128, 128, 8
        $region24: #{tpu_custom_call.1} parent=11 // pred_fallthru
          _
        // Predicated region
        $region25: #{tpu_custom_call.1} parent=11 // pred_check
          %p218 = pneg %p157
        $region26: #{tpu_custom_call.1} parent=11 // pred_check_branch
          %220 = sbr.rel (%p218) target = $region28
        $region27: #{tpu_custom_call.1} parent=11 // pred_region
          _
        $region28: #{tpu_custom_call.1} parent=11 // pred_fallthru
          _
      $region12: #{tpu_custom_call.1} parent=5 // pred_fallthru
        _
      %p221 = scmp.lt.s32.totalorder %s21, 2
      // Predicated region
      $region29: #{tpu_custom_call.1} parent=5 // pred_check
        %p222 = pneg %p221
      $region30: #{tpu_custom_call.1} parent=5 // pred_check_branch
        %224 = sbr.rel (%p222) target = $region32
      $region31: #{tpu_custom_call.1} parent=5 // pred_region
        // Predicated region
        $region33: #{tpu_custom_call.1} parent=31 // pred_check
          %p225 = pneg %p41
        $region34: #{tpu_custom_call.1} parent=31 // pred_check_branch
          %227 = sbr.rel (%p225) target = $region36
        $region35: #{tpu_custom_call.1} parent=31 // pred_region
          %s228 = sand.u32 %s31, 1
          %s229 = scalar_lea.sflag [#allocation3], %s228
          %s230 = sand.u32 %s31, 1
          %s231 = smul.addr %s230, 64
          %s232 = scalar_lea.vmem [#allocation2], %s231
          %234 = vsyncadd %s229, 0
          %s235 = smul.addr %s21, 8
          %s236 = smul.addr %s235, 8
          %s237 = scalar_lea.hbm %s0, %s236
          %s238 = sshll.u32 %s237, 4
          %s239 = int_to_ptr.hbm [resolvable:$true] %s238
          %s240 = sshll.u32 %s232, 4
          %s241 = int_to_ptr.vmem [resolvable:$true] %s240
          %246 = dma.hbm_to_vmem [thread:$0]  %s239, 1024, %s241, %s229, 256, 256, 16
        $region36: #{tpu_custom_call.1} parent=31 // pred_fallthru
          _
        // Predicated region
        $region37: #{tpu_custom_call.1} parent=31 // pred_check
          %p247 = pneg %p67
        $region38: #{tpu_custom_call.1} parent=31 // pred_check_branch
          %249 = sbr.rel (%p247) target = $region40
        $region39: #{tpu_custom_call.1} parent=31 // pred_region
          %s250 = sand.u32 %s21, 1
          %s251 = scalar_lea.sflag [#allocation6], %s250
          %s252 = sand.u32 %s57, 1
          %s253 = smul.addr %s252, 64
          %s254 = scalar_lea.vmem [#allocation5], %s253
          %256 = vsyncadd %s251, 0
          %s257 = smul.addr %s21, 8
          %s258 = smul.addr %s257, 8
          %s259 = scalar_lea.hbm %s1, %s258
          %s260 = sshll.u32 %s259, 4
          %s261 = int_to_ptr.hbm [resolvable:$true] %s260
          %s262 = sshll.u32 %s254, 4
          %s263 = int_to_ptr.vmem [resolvable:$true] %s262
          %268 = dma.hbm_to_vmem [thread:$0]  %s261, 1024, %s263, %s251, 256, 256, 16
        $region40: #{tpu_custom_call.1} parent=31 // pred_fallthru
          _
      $region32: #{tpu_custom_call.1} parent=5 // pred_fallthru
        _
      %p269 = scmp.le.s32.totalorder 1, %s21
      %p270 = scmp.lt.s32.totalorder %s21, 3
      %p271 = pnand %p269, %p270
      %p272 = pneg %p271
      // Predicated region
      $region41: #{tpu_custom_call.1} parent=5 // pred_check
        _
      $region42: #{tpu_custom_call.1} parent=5 // pred_check_branch
        %274 = sbr.rel (%p271) target = $region44
      $region43: #{tpu_custom_call.1} parent=5 // pred_region
        %s275 = ssub.s32 %s21, 1
        %s276 = sand.u32 %s34, 1
        %s277 = scalar_lea.sflag [#allocation3], %s276
        %s278 = sand.u32 %s34, 1
        %s279 = smul.addr %s278, 64
        %s280 = scalar_lea.vmem [#allocation2], %s279
        // Predicated region
        $region45: #{tpu_custom_call.1} parent=43 // pred_check
          %p281 = pneg %p47
        $region46: #{tpu_custom_call.1} parent=43 // pred_check_branch
          %283 = sbr.rel (%p281) target = $region48
        $region47: #{tpu_custom_call.1} parent=43 // pred_region
          %285 = dma.done %s277, 1024
        $region48: #{tpu_custom_call.1} parent=43 // pred_fallthru
          _
        %s286 = sand.u32 %s26, 1
        %s287 = scalar_lea.sflag [#allocation6], %s286
        %s288 = sand.u32 %s60, 1
        %s289 = smul.addr %s288, 64
        %s290 = scalar_lea.vmem [#allocation5], %s289
        // Predicated region
        $region49: #{tpu_custom_call.1} parent=43 // pred_check
          %p291 = pneg %p73
        $region50: #{tpu_custom_call.1} parent=43 // pred_check_branch
          %293 = sbr.rel (%p291) target = $region52
        $region51: #{tpu_custom_call.1} parent=43 // pred_region
          %295 = dma.done %s287, 1024
        $region52: #{tpu_custom_call.1} parent=43 // pred_fallthru
          _
        // Predicated region
        $region53: #{tpu_custom_call.1} parent=43 // pred_check
          %p296 = pneg %p136
        $region54: #{tpu_custom_call.1} parent=43 // pred_check_branch
          %298 = sbr.rel (%p296) target = $region56
        $region55: #{tpu_custom_call.1} parent=43 // pred_region
          %300 = dma.done [#allocation6], 512
        $region56: #{tpu_custom_call.1} parent=43 // pred_fallthru
          _
        %s301 = sand.u32 %s34, 1
        %s302 = scalar_lea.sflag [#allocation3], %s301
        %s303 = sand.u32 %s34, 1
        %s304 = smul.addr %s303, 64
        %s305 = scalar_lea.vmem [#allocation2], %s304
        %p306 = pneg %p47
        %p307 = pneg %p44
        %s308 = sand.u32 %s26, 1
        %s309 = scalar_lea.sflag [#allocation6], %s308
        %s310 = sand.u32 %s60, 1
        %s311 = smul.addr %s310, 64
        %s312 = scalar_lea.vmem [#allocation5], %s311
        %p313 = pneg %p73
        %p314 = pneg %p70
        %p315 = pneg %p94
        %p316 = pneg %p91
        %p317 = pneg %p115
        %p318 = pneg %p112
        %p319 = pneg %p136
        %p320 = pneg %p133
        %p321 = pneg %p157
        %p322 = pneg %p154
        %p323 = pneg %p183
        %p324 = pneg %p180
        %s325 = sand.u32 %s170, 1
        %s326 = scalar_lea.sflag [#allocation4], %s325
        %s327 = sand.u32 %s170, 1
        %s328 = smul.addr %s327, 64
        %s329 = scalar_lea.vmem [#allocation8], %s328
        %v330 = vld [vmem:[%s2] sm:$0xff]
        %v331 = vld [vmem:[%s2 + $0x8] sm:$0xff]
        %v332 = vld [vmem:[%s2 + $0x10] sm:$0xff]
        %v333 = vld [vmem:[%s2 + $0x18] sm:$0xff]
        %v334 = vld [vmem:[%s3] sm:$0xff]
        %v335 = vld [vmem:[%s3 + $0x8] sm:$0xff]
        %v336 = vld [vmem:[%s3 + $0x10] sm:$0xff]
        %v337 = vld [vmem:[%s3 + $0x18] sm:$0xff]
        %v338 = vld [vmem:[#allocation7] sm:$0xff]
        %v339 = vld [vmem:[#allocation7 + $0x8] sm:$0xff]
        %v340 = vld [vmem:[#allocation7 + $0x10] sm:$0xff]
        %v341 = vld [vmem:[#allocation7 + $0x18] sm:$0xff]
        %v342 = vld [vmem:[%s5] sm:$0x1]
        %v343 = vld [vmem:[%s280] sm:$0xff]
        %v344 = vld [vmem:[%s280 + $0x8] sm:$0xff]
        %v345 = vld [vmem:[%s280 + $0x10] sm:$0xff]
        %v346 = vld [vmem:[%s280 + $0x18] sm:$0xff]
        %v347 = vld [vmem:[%s280 + $0x20] sm:$0xff]
        %v348 = vld [vmem:[%s280 + $0x28] sm:$0xff]
        %v349 = vld [vmem:[%s280 + $0x30] sm:$0xff]
        %v350 = vld [vmem:[%s280 + $0x38] sm:$0xff]
        %v351 = vld [vmem:[%s290] sm:$0xff]
        %v352 = vld [vmem:[%s290 + $0x8] sm:$0xff]
        %v353 = vld [vmem:[%s290 + $0x10] sm:$0xff]
        %v354 = vld [vmem:[%s290 + $0x18] sm:$0xff]
        %v355 = vld [vmem:[%s290 + $0x20] sm:$0xff]
        %v356 = vld [vmem:[%s290 + $0x28] sm:$0xff]
        %v357 = vld [vmem:[%s290 + $0x30] sm:$0xff]
        %v358 = vld [vmem:[%s290 + $0x38] sm:$0xff]
        %v359 = vadd.f32 %v343, %v345
        %v360 = vadd.f32 %v359, %v347
        %v361 = vadd.f32 %v360, %v349
        %v362 = vrot.slane %v361, 4
        %v363 = vadd.f32 %v361, %v362
        %v364 = vrot.slane %v363, 2
        %v365 = vadd.f32 %v363, %v364
        %v366 = vrot.slane %v365, 1
        %v367 = vadd.f32 %v365, %v366
        %v368 = vadd.f32 %v344, %v346
        %v369 = vadd.f32 %v368, %v348
        %v370 = vadd.f32 %v369, %v350
        %v371 = vrot.slane %v370, 4
        %v372 = vadd.f32 %v370, %v371
        %v373 = vrot.slane %v372, 2
        %v374 = vadd.f32 %v372, %v373
        %v375 = vrot.slane %v374, 1
        %v376 = vadd.f32 %v374, %v375
        %v377 = vmul.f32 %v343, %v343
        %v378 = vmul.f32 %v344, %v344
        %v379 = vmul.f32 %v345, %v345
        %v380 = vmul.f32 %v346, %v346
        %v381 = vmul.f32 %v347, %v347
        %v382 = vmul.f32 %v348, %v348
        %v383 = vmul.f32 %v349, %v349
        %v384 = vmul.f32 %v350, %v350
        %v385 = vadd.f32 %v377, %v379
        %v386 = vadd.f32 %v385, %v381
        %v387 = vadd.f32 %v386, %v383
        %v388 = vrot.slane %v387, 4
        %v389 = vadd.f32 %v387, %v388
        %v390 = vrot.slane %v389, 2
        %v391 = vadd.f32 %v389, %v390
        %v392 = vrot.slane %v391, 1
        %v393 = vadd.f32 %v391, %v392
        %v394 = vadd.f32 %v378, %v380
        %v395 = vadd.f32 %v394, %v382
        %v396 = vadd.f32 %v395, %v384
        %v397 = vrot.slane %v396, 4
        %v398 = vadd.f32 %v396, %v397
        %v399 = vrot.slane %v398, 2
        %v400 = vadd.f32 %v398, %v399
        %v401 = vrot.slane %v400, 1
        %v402 = vadd.f32 %v400, %v401
        %v403 = vmul.f32 %v367, 0.03125
        %v404 = vmul.f32 %v376, 0.03125
        %v405 = vmul.f32 %v393, 0.03125
        %v406 = vmul.f32 %v402, 0.03125
        %v407 = vmul.f32 %v403, %v403
        %v408 = vmul.f32 %v404, %v404
        %v409 = vsub.f32 %v405, %v407
        %v410 = vsub.f32 %v406, %v408
        %v411 = vadd.f32 %v409, 1e-05
        %v412 = vadd.f32 %v410, 1e-05
        %v413 = vrsqrt.pop %v411
        %v414 = vmul.f32 %v413, %v411
        %v415 = vmul.f32 %v414, %v413
        %v416 = vmul.f32 0.5, %v415
        %v417 = vsub.f32 1.5, %v416
        %v418 = vmul.f32 %v413, %v417
        %vm419 = vweird.f32 %v411
        %vm420 = vweird.f32 %v413
        %vm421 = vmor %vm419, %vm420
        %v422 = vsel %vm421, %v413, %v418
        %v423 = vrsqrt.pop %v412
        %v424 = vmul.f32 %v423, %v412
        %v425 = vmul.f32 %v424, %v423
        %v426 = vmul.f32 0.5, %v425
        %v427 = vsub.f32 1.5, %v426
        %v428 = vmul.f32 %v423, %v427
        %vm429 = vweird.f32 %v412
        %vm430 = vweird.f32 %v423
        %vm431 = vmor %vm429, %vm430
        %v432 = vsel %vm431, %v423, %v428
        %v433 = vsub.f32 %v343, %v403
        %v434 = vsub.f32 %v344, %v404
        %v435 = vsub.f32 %v345, %v403
        %v436 = vsub.f32 %v346, %v404
        %v437 = vsub.f32 %v347, %v403
        %v438 = vsub.f32 %v348, %v404
        %v439 = vsub.f32 %v349, %v403
        %v440 = vsub.f32 %v350, %v404
        %v441 = vmul.f32 %v433, %v422
        %v442 = vmul.f32 %v434, %v432
        %v443 = vmul.f32 %v435, %v422
        %v444 = vmul.f32 %v436, %v432
        %v445 = vmul.f32 %v437, %v422
        %v446 = vmul.f32 %v438, %v432
        %v447 = vmul.f32 %v439, %v422
        %v448 = vmul.f32 %v440, %v432
        %450 = vset.pattern.permute.xlu0 0
        %451 = vperm.xlu0 %450, %v330
        %v452 = vpop.permute.xlu0 %451
        %455 = vset.pattern.permute.xlu0 0
        %456 = vperm.xlu0 %455, %v331
        %v457 = vpop.permute.xlu0 %456
        %460 = vset.pattern.permute.xlu0 0
        %461 = vperm.xlu0 %460, %v332
        %v462 = vpop.permute.xlu0 %461
        %465 = vset.pattern.permute.xlu0 0
        %466 = vperm.xlu0 %465, %v333
        %v467 = vpop.permute.xlu0 %466
        %v469 = vmul.f32 %v441, %v452
        %v470 = vmul.f32 %v442, %v452
        %v471 = vmul.f32 %v443, %v457
        %v472 = vmul.f32 %v444, %v457
        %v473 = vmul.f32 %v445, %v462
        %v474 = vmul.f32 %v446, %v462
        %v475 = vmul.f32 %v447, %v467
        %v476 = vmul.f32 %v448, %v467
        %477 = vset.pattern.permute.xlu0 1
        %478 = vperm.xlu0 %477, %v330
        %v479 = vpop.permute.xlu0 %478
        %481 = vset.pattern.permute.xlu0 1
        %482 = vperm.xlu0 %481, %v331
        %v483 = vpop.permute.xlu0 %482
        %485 = vset.pattern.permute.xlu0 1
        %486 = vperm.xlu0 %485, %v332
        %v487 = vpop.permute.xlu0 %486
        %489 = vset.pattern.permute.xlu0 1
        %490 = vperm.xlu0 %489, %v333
        %v491 = vpop.permute.xlu0 %490
        %v493 = vadd.f32 %v469, %v479
        %v494 = vadd.f32 %v470, %v479
        %v495 = vadd.f32 %v471, %v483
        %v496 = vadd.f32 %v472, %v483
        %v497 = vadd.f32 %v473, %v487
        %v498 = vadd.f32 %v474, %v487
        %v499 = vadd.f32 %v475, %v491
        %v500 = vadd.f32 %v476, %v491
        %v501 = vadd.f32 %v351, %v353
        %v502 = vadd.f32 %v501, %v355
        %v503 = vadd.f32 %v502, %v357
        %v504 = vrot.slane %v503, 4
        %v505 = vadd.f32 %v503, %v504
        %v506 = vrot.slane %v505, 2
        %v507 = vadd.f32 %v505, %v506
        %v508 = vrot.slane %v507, 1
        %v509 = vadd.f32 %v507, %v508
        %v510 = vadd.f32 %v352, %v354
        %v511 = vadd.f32 %v510, %v356
        %v512 = vadd.f32 %v511, %v358
        %v513 = vrot.slane %v512, 4
        %v514 = vadd.f32 %v512, %v513
        %v515 = vrot.slane %v514, 2
        %v516 = vadd.f32 %v514, %v515
        %v517 = vrot.slane %v516, 1
        %v518 = vadd.f32 %v516, %v517
        %v519 = vmul.f32 %v351, %v351
        %v520 = vmul.f32 %v352, %v352
        %v521 = vmul.f32 %v353, %v353
        %v522 = vmul.f32 %v354, %v354
        %v523 = vmul.f32 %v355, %v355
        %v524 = vmul.f32 %v356, %v356
        %v525 = vmul.f32 %v357, %v357
        %v526 = vmul.f32 %v358, %v358
        %v527 = vadd.f32 %v519, %v521
        %v528 = vadd.f32 %v527, %v523
        %v529 = vadd.f32 %v528, %v525
        %v530 = vrot.slane %v529, 4
        %v531 = vadd.f32 %v529, %v530
        %v532 = vrot.slane %v531, 2
        %v533 = vadd.f32 %v531, %v532
        %v534 = vrot.slane %v533, 1
        %v535 = vadd.f32 %v533, %v534
        %v536 = vadd.f32 %v520, %v522
        %v537 = vadd.f32 %v536, %v524
        %v538 = vadd.f32 %v537, %v526
        %v539 = vrot.slane %v538, 4
        %v540 = vadd.f32 %v538, %v539
        %v541 = vrot.slane %v540, 2
        %v542 = vadd.f32 %v540, %v541
        %v543 = vrot.slane %v542, 1
        %v544 = vadd.f32 %v542, %v543
        %v545 = vmul.f32 %v509, 0.03125
        %v546 = vmul.f32 %v518, 0.03125
        %v547 = vmul.f32 %v535, 0.03125
        %v548 = vmul.f32 %v544, 0.03125
        %v549 = vmul.f32 %v545, %v545
        %v550 = vmul.f32 %v546, %v546
        %v551 = vsub.f32 %v547, %v549
        %v552 = vsub.f32 %v548, %v550
        %v553 = vadd.f32 %v551, 1e-05
        %v554 = vadd.f32 %v552, 1e-05
        %v555 = vrsqrt.pop %v553
        %v556 = vmul.f32 %v555, %v553
        %v557 = vmul.f32 %v556, %v555
        %v558 = vmul.f32 0.5, %v557
        %v559 = vsub.f32 1.5, %v558
        %v560 = vmul.f32 %v555, %v559
        %vm561 = vweird.f32 %v553
        %vm562 = vweird.f32 %v555
        %vm563 = vmor %vm561, %vm562
        %v564 = vsel %vm563, %v555, %v560
        %v565 = vrsqrt.pop %v554
        %v566 = vmul.f32 %v565, %v554
        %v567 = vmul.f32 %v566, %v565
        %v568 = vmul.f32 0.5, %v567
        %v569 = vsub.f32 1.5, %v568
        %v570 = vmul.f32 %v565, %v569
        %vm571 = vweird.f32 %v554
        %vm572 = vweird.f32 %v565
        %vm573 = vmor %vm571, %vm572
        %v574 = vsel %vm573, %v565, %v570
        %v575 = vsub.f32 %v351, %v545
        %v576 = vsub.f32 %v352, %v546
        %v577 = vsub.f32 %v353, %v545
        %v578 = vsub.f32 %v354, %v546
        %v579 = vsub.f32 %v355, %v545
        %v580 = vsub.f32 %v356, %v546
        %v581 = vsub.f32 %v357, %v545
        %v582 = vsub.f32 %v358, %v546
        %v583 = vmul.f32 %v575, %v564
        %v584 = vmul.f32 %v576, %v574
        %v585 = vmul.f32 %v577, %v564
        %v586 = vmul.f32 %v578, %v574
        %v587 = vmul.f32 %v579, %v564
        %v588 = vmul.f32 %v580, %v574
        %v589 = vmul.f32 %v581, %v564
        %v590 = vmul.f32 %v582, %v574
        %591 = vset.pattern.permute.xlu0 2
        %592 = vperm.xlu0 %591, %v330
        %v593 = vpop.permute.xlu0 %592
        %595 = vset.pattern.permute.xlu0 2
        %596 = vperm.xlu0 %595, %v331
        %v597 = vpop.permute.xlu0 %596
        %599 = vset.pattern.permute.xlu0 2
        %600 = vperm.xlu0 %599, %v332
        %v601 = vpop.permute.xlu0 %600
        %603 = vset.pattern.permute.xlu0 2
        %604 = vperm.xlu0 %603, %v333
        %v605 = vpop.permute.xlu0 %604
        %v607 = vmul.f32 %v583, %v593
        %v608 = vmul.f32 %v584, %v593
        %v609 = vmul.f32 %v585, %v597
        %v610 = vmul.f32 %v586, %v597
        %v611 = vmul.f32 %v587, %v601
        %v612 = vmul.f32 %v588, %v601
        %v613 = vmul.f32 %v589, %v605
        %v614 = vmul.f32 %v590, %v605
        %615 = vset.pattern.permute.xlu0 3
        %616 = vperm.xlu0 %615, %v330
        %v617 = vpop.permute.xlu0 %616
        %619 = vset.pattern.permute.xlu0 3
        %620 = vperm.xlu0 %619, %v331
        %v621 = vpop.permute.xlu0 %620
        %623 = vset.pattern.permute.xlu0 3
        %624 = vperm.xlu0 %623, %v332
        %v625 = vpop.permute.xlu0 %624
        %627 = vset.pattern.permute.xlu0 3
        %628 = vperm.xlu0 %627, %v333
        %v629 = vpop.permute.xlu0 %628
        %v631 = vadd.f32 %v607, %v617
        %v632 = vadd.f32 %v608, %v617
        %v633 = vadd.f32 %v609, %v621
        %v634 = vadd.f32 %v610, %v621
        %v635 = vadd.f32 %v611, %v625
        %v636 = vadd.f32 %v612, %v625
        %v637 = vadd.f32 %v613, %v629
        %v638 = vadd.f32 %v614, %v629
        %v639 = vadd.f32 %v493, %v494
        %640 = vadd.xlane.f32.xlu0 %v639
        %v641 = vpop.xlane.xlu0 %640
        %v642 = vadd.f32 %v495, %v496
        %643 = vadd.xlane.f32.xlu0 %v642
        %v644 = vpop.xlane.xlu0 %643
        %v645 = vadd.f32 %v497, %v498
        %646 = vadd.xlane.f32.xlu0 %v645
        %v647 = vpop.xlane.xlu0 %646
        %v648 = vadd.f32 %v499, %v500
        %649 = vadd.xlane.f32.xlu0 %v648
        %v650 = vpop.xlane.xlu0 %649
        %v651 = vadd.f32 %v631, %v632
        %652 = vadd.xlane.f32.xlu0 %v651
        %v653 = vpop.xlane.xlu0 %652
        %v654 = vadd.f32 %v633, %v634
        %655 = vadd.xlane.f32.xlu0 %v654
        %v656 = vpop.xlane.xlu0 %655
        %v657 = vadd.f32 %v635, %v636
        %658 = vadd.xlane.f32.xlu0 %v657
        %v659 = vpop.xlane.xlu0 %658
        %v660 = vadd.f32 %v637, %v638
        %661 = vadd.xlane.f32.xlu0 %v660
        %v662 = vpop.xlane.xlu0 %661
        %v663 = vadd.f32 %v641, %v653
        %v664 = vadd.f32 %v644, %v656
        %v665 = vadd.f32 %v647, %v659
        %v666 = vadd.f32 %v650, %v662
        %v667 = vmul.f32 %v663, 0.00390625
        %v668 = vmul.f32 %v664, 0.00390625
        %v669 = vmul.f32 %v665, 0.00390625
        %v670 = vmul.f32 %v666, 0.00390625
        %v675 = vlaneseq
        %v676 = vand.u32 %v675, 127
        %v677 = vperm.slane %v667, %v676
        %v678 = vadd.s32 %v676, 4294967288
        %v679 = vperm.slane %v668, %v678
        %vm680 = vcmask 130112
        %v681 = vsel %vm680, %v679, %v677
        %v682 = vadd.s32 %v676, 4294967280
        %v683 = vperm.slane %v669, %v682
        %vm684 = vcmask 195712
        %v685 = vsel %vm684, %v683, %v681
        %v686 = vadd.s32 %v676, 4294967272
        %v687 = vperm.slane %v670, %v686
        %vm688 = vcmask 261312
        %v689 = vsel %vm688, %v687, %v685
        %vm690 = vcmask 261120
        %v691 = vsel %vm690, %v689, 0
        %693 = vmatpush.msra.mxu0 0.0
        %694 = vmatpush.msra.mxu0 0.0
        %695 = vmatpush.msra.mxu0 0.0
        %696 = vmatpush.msra.mxu0 0.0
        %697 = vmatpush.msra.mxu0 0.0
        %698 = vmatpush.msra.mxu0 0.0
        %699 = vmatpush.msra.mxu0 0.0
        %700 = vmatpush.msra.mxu0 0.0
        %701 = vmatpush.msra.mxu0 0.0
        %702 = vmatpush.msra.mxu0 0.0
        %703 = vmatpush.msra.mxu0 0.0
        %704 = vmatpush.msra.mxu0 0.0
        %705 = vmatpush.msra.mxu0 %v337
        %706 = vmatpush.msra.mxu0 %v336
        %707 = vmatpush.msra.mxu0 %v335
        %708 = vmatpush.msra.mxu0 %v334
        %709 = vmatmul.f32.gmra.mxu0 %v691
        %v710 = vpop.f32.mrf.mxu0
        %v711 = vadd.f32 %v342, %v710
        %712 = vdwg.mxu0
        %v713 = vmax.f32 %v711, 0.0
        %v715 = vperm.slane %v342, 0
        %716 = vrot.lane.b32.xlu0 %v715, 96
        %v717 = vpop.permute.xlu0 %716
        %v720 = vsel %vm690, %v713, 0
        %722 = vmatpush.msra.mxu0 0.0
        %723 = vmatpush.msra.mxu0 0.0
        %724 = vmatpush.msra.mxu0 0.0
        %725 = vmatpush.msra.mxu0 0.0
        %726 = vmatpush.msra.mxu0 0.0
        %727 = vmatpush.msra.mxu0 0.0
        %728 = vmatpush.msra.mxu0 0.0
        %729 = vmatpush.msra.mxu0 0.0
        %730 = vmatpush.msra.mxu0 0.0
        %731 = vmatpush.msra.mxu0 0.0
        %732 = vmatpush.msra.mxu0 0.0
        %733 = vmatpush.msra.mxu0 0.0
        %734 = vmatpush.msra.mxu0 %v341
        %735 = vmatpush.msra.mxu0 %v340
        %736 = vmatpush.msra.mxu0 %v339
        %737 = vmatpush.msra.mxu0 %v338
        %738 = vmatmul.f32.gmra.mxu0 %v720
        %v739 = vpop.f32.mrf.mxu0
        %v740 = vadd.f32 %v717, %v739
        %741 = vdwg.mxu0
        %v742 = vsub.f32 0.0, %v740
        %v743 = vmul.f32 %v742, 1.442695
        %v744 = vpow.pop %v743
        %v745 = vadd.f32 %v744, 1.0
        %v746 = vrcp.pop %v745
        %v747 = vmul.f32 %v745, %v746
        %v748 = vsub.f32 1.0, %v747
        %v749 = vmul.f32 %v746, %v748
        %v750 = vadd.f32 %v746, %v749
        %vm751 = vweird.f32 %v745
        %vm752 = vweird.f32 %v746
        %vm753 = vmor %vm751, %vm752
        %v754 = vsel %vm753, %v746, %v750
        %v755 = vand.u32 2147483647, %v745
        %vm756 = vcmp.eq.f32.partialorder %v755, 8.507059e+37
        %v757 = vand.u32 %v745, 2147483648
        %v758 = vor.u32 1.1754944e-38, %v757
        %v759 = vsel %vm756, %v758, %v754
        %v760 = vmul.f32 1.0, %v759
        %v761 = vperm.slane %v760, 0
        %v762 = vlaneseq
        %v763 = vshrl.u32 %v762, 7
        %765 = vset.pattern.permute.xlu0 %v763
        %766 = vperm.xlu0 %765, %v761
        %v767 = vpop.permute.xlu0 %766
        %v768 = vlaneseq
        %v769 = vshrl.u32 %v768, 7
        %v770 = vadd.s32 %v769, 8
        %771 = vset.pattern.permute.xlu0 %v770
        %772 = vperm.xlu0 %771, %v761
        %v773 = vpop.permute.xlu0 %772
        %v774 = vlaneseq
        %v775 = vshrl.u32 %v774, 7
        %v776 = vadd.s32 %v775, 16
        %777 = vset.pattern.permute.xlu0 %v776
        %778 = vperm.xlu0 %777, %v761
        %v779 = vpop.permute.xlu0 %778
        %v780 = vlaneseq
        %v781 = vshrl.u32 %v780, 7
        %v782 = vadd.s32 %v781, 24
        %783 = vset.pattern.permute.xlu0 %v782
        %784 = vperm.xlu0 %783, %v761
        %v785 = vpop.permute.xlu0 %784
        %v786 = vsub.f32 %v493, %v631
        %v787 = vsub.f32 %v494, %v632
        %v788 = vsub.f32 %v495, %v633
        %v789 = vsub.f32 %v496, %v634
        %v790 = vsub.f32 %v497, %v635
        %v791 = vsub.f32 %v498, %v636
        %v792 = vsub.f32 %v499, %v637
        %v793 = vsub.f32 %v500, %v638
        %v794 = vmul.f32 %v767, %v786
        %v795 = vmul.f32 %v767, %v787
        %v796 = vmul.f32 %v773, %v788
        %v797 = vmul.f32 %v773, %v789
        %v798 = vmul.f32 %v779, %v790
        %v799 = vmul.f32 %v779, %v791
        %v800 = vmul.f32 %v785, %v792
        %v801 = vmul.f32 %v785, %v793
        %v802 = vadd.f32 %v631, %v794
        %v803 = vadd.f32 %v632, %v795
        %v804 = vadd.f32 %v633, %v796
        %v805 = vadd.f32 %v634, %v797
        %v806 = vadd.f32 %v635, %v798
        %v807 = vadd.f32 %v636, %v799
        %v808 = vadd.f32 %v637, %v800
        %v809 = vadd.f32 %v638, %v801
        %810 = vst [vmem:[%s329] sm:$0xff] %v802
        %811 = vst [vmem:[%s329 + $0x8] sm:$0xff] %v803
        %812 = vst [vmem:[%s329 + $0x10] sm:$0xff] %v804
        %813 = vst [vmem:[%s329 + $0x18] sm:$0xff] %v805
        %814 = vst [vmem:[%s329 + $0x20] sm:$0xff] %v806
        %815 = vst [vmem:[%s329 + $0x28] sm:$0xff] %v807
        %816 = vst [vmem:[%s329 + $0x30] sm:$0xff] %v808
        %817 = vst [vmem:[%s329 + $0x38] sm:$0xff] %v809
        %s818 = sand.u32 %s170, 1
        %s819 = scalar_lea.sflag [#allocation4], %s818
        %s820 = sand.u32 %s170, 1
        %s821 = smul.addr %s820, 64
        %s822 = scalar_lea.vmem [#allocation8], %s821
        // Predicated region
        $region57: #{tpu_custom_call.1} parent=43 // pred_check
          %p823 = pneg %p180
        $region58: #{tpu_custom_call.1} parent=43 // pred_check_branch
          %825 = sbr.rel (%p823) target = $region60
        $region59: #{tpu_custom_call.1} parent=43 // pred_region
          %827 = vsyncadd %s819, 0
          %s828 = smul.addr %s26, 8
          %s829 = smul.addr %s828, 8
          %s830 = scalar_lea.hbm %s6, %s829
          %s831 = sshll.u32 %s822, 4
          %s832 = int_to_ptr.vmem [resolvable:$true] %s831
          %s833 = sshll.u32 %s830, 4
          %s834 = int_to_ptr.hbm [resolvable:$true] %s833
          %839 = dma.vmem_to_hbm [thread:$0]  %s832, 1024, %s834, %s819, 256, 256, 16
        $region60: #{tpu_custom_call.1} parent=43 // pred_fallthru
          _
      $region44: #{tpu_custom_call.1} parent=5 // pred_fallthru
        _
      %p840 = scmp.le.s32.totalorder 2, %s21
      // Predicated region
      $region61: #{tpu_custom_call.1} parent=5 // pred_check
        %p841 = pneg %p840
      $region62: #{tpu_custom_call.1} parent=5 // pred_check_branch
        %843 = sbr.rel (%p841) target = $region64
      $region63: #{tpu_custom_call.1} parent=5 // pred_region
        %s844 = ssub.s32 %s21, 2
        // Predicated region
        $region65: #{tpu_custom_call.1} parent=63 // pred_check
          %p845 = pneg %p186
        $region66: #{tpu_custom_call.1} parent=63 // pred_check_branch
          %847 = sbr.rel (%p845) target = $region68
        $region67: #{tpu_custom_call.1} parent=63 // pred_region
          %s848 = sand.u32 %s171, 1
          %s849 = scalar_lea.sflag [#allocation4], %s848
          %s850 = sand.u32 %s171, 1
          %s851 = smul.addr %s850, 64
          %s852 = scalar_lea.vmem [#allocation8], %s851
          %854 = dma.done %s849, 1024
        $region68: #{tpu_custom_call.1} parent=63 // pred_fallthru
          _
      $region64: #{tpu_custom_call.1} parent=5 // pred_fallthru
        _
    $region6: #{tpu_custom_call.1} parent=1 // loop_footer
      %s25 = sadd.s32 1, %s21
    $region7: #{tpu_custom_call.1} parent=1 // loop_footer_branch
      %20 = sbr.rel target = $region3
    $region8: #{tpu_custom_call.1} parent=1 // loop_exit
      _
    %855 = vsyncpa [#allocation3], 1
    %s856 = scalar_lea.sflag [#allocation3], 1
    %857 = vsyncpa %s856, 1
    %858 = vsyncpa [#allocation6], 1
    %s859 = scalar_lea.sflag [#allocation6], 1
    %860 = vsyncpa %s859, 1
    %861 = vsyncpa [#allocation4], 1
    %s862 = scalar_lea.sflag [#allocation4], 1
    %863 = vsyncpa %s862, 1

</llo_original>
